<compile_context>
chip_gen: v7x
topology: tpu7x:2x2x1
jax: 0.10.0
libtpu: 0.0.40
codegen_flags: <defaults>
</compile_context>

<pallas_src>
import jax
import jax.numpy as jnp
from jax import lax
from jax.experimental import pallas as pl
from jax.experimental.pallas import tpu as pltpu


def _round_up(x, m):
    return ((x + m - 1) // m) * m


_VMEM_LIMIT = 48 * 1024 * 1024  # <= v7x physical VMEM (64 MiB); fine on v5e/v6e.


# ----------------------------------------------------------------------------
# Pallas kernels
# ----------------------------------------------------------------------------
def _matmul_bias_kernel(a_ref, b_ref, bias_ref, o_ref):
    o_ref[...] = (
        jnp.dot(a_ref[...], b_ref[...], preferred_element_type=jnp.float32)
        + bias_ref[...]
    )


def matmul_bias(a, b, bias, tm=None):
    """Computes a @ b + bias with a Pallas MXU kernel.

    K and N are zero-padded to multiples of 128 so loads/stores are lane-dense
    and unmasked; M is tiled with 512-row tiles when large, or a single
    round_up(M, 8)-row tile when tiny.
    """
    M, K = a.shape
    _, N = b.shape
    Kp = _round_up(K, 128)
    Np = _round_up(N, 128)
    if tm is None:
        tm = 512 if M >= 512 else max(8, _round_up(M, 8))
    tm = min(tm, max(8, _round_up(M, 8)))
    Mp = _round_up(M, tm)

    a = a.astype(jnp.float32)
    b = b.astype(jnp.float32)
    if (Mp, Kp) != (M, K):
        a = jnp.pad(a, ((0, Mp - M), (0, Kp - K)))
    if (Kp, Np) != (K, N):
        b = jnp.pad(b, ((0, Kp - K), (0, Np - N)))
    bias2 = jnp.pad(bias.reshape(1, N).astype(jnp.float32), ((0, 0), (0, Np - N)))

    out = pl.pallas_call(
        _matmul_bias_kernel,
        out_shape=jax.ShapeDtypeStruct((Mp, Np), jnp.float32),
        grid=(Mp // tm,),
        in_specs=[
            pl.BlockSpec((tm, Kp), lambda i: (i, 0)),
            pl.BlockSpec((Kp, Np), lambda i: (0, 0)),
            pl.BlockSpec((1, Np), lambda i: (0, 0)),
        ],
        out_specs=pl.BlockSpec((tm, Np), lambda i: (i, 0)),
        compiler_params=pltpu.CompilerParams(
            dimension_semantics=("parallel",),
            vmem_limit_bytes=_VMEM_LIMIT,
        ),
    )(a, b, bias2)
    return out[:M, :N]


def _max4_kernel(x_ref, o_ref):
    # x_ref: (4, rt, 128) -> elementwise max over the 4 pooling-window taps.
    o_ref[...] = jnp.max(x_ref[...], axis=0)


def maxpool_2x2_s21_nhwc(x, rt=128):
    """MaxPool2d(kernel=(2,2), stride=(2,1)), NHWC, floor mode (PyTorch default)."""
    N, H, W, C = x.shape
    Ho = (H - 2) // 2 + 1
    Wo = W - 1
    cands = [x[:, di:di + 2 * Ho:2, dj:dj + Wo, :]
             for di in range(2) for dj in range(2)]
    stacked = jnp.stack(cands, axis=0).reshape(4, -1)  # (4, P)
    P = stacked.shape[1]
    Pp = _round_up(P, rt * 128)
    if Pp != P:
        stacked = jnp.pad(stacked, ((0, 0), (0, Pp - P)))
    R = Pp // 128
    stacked = stacked.reshape(4, R, 128).astype(jnp.float32)
    out = pl.pallas_call(
        _max4_kernel,
        out_shape=jax.ShapeDtypeStruct((R, 128), jnp.float32),
        grid=(R // rt,),
        in_specs=[pl.BlockSpec((4, rt, 128), lambda i: (0, i, 0))],
        out_specs=pl.BlockSpec((rt, 128), lambda i: (i, 0)),
        compiler_params=pltpu.CompilerParams(
            dimension_semantics=("parallel",),
        ),
    )(stacked)
    return out.reshape(-1)[:P].reshape(N, Ho, Wo, C)


def _bilstm_kernel(gates_ref, whh_t_ref, o_ref, h_sc, c_sc):
    # gates_ref: (T, Np, 4H) precomputed x_t @ W_ih^T + b_ih + b_hh (one direction)
    # whh_t_ref: (H, 4H);  o_ref: (T, Np, H)
    T = gates_ref.shape[0]
    H = whh_t_ref.shape[0]
    h_sc[...] = jnp.zeros_like(h_sc)
    c_sc[...] = jnp.zeros_like(c_sc)

    def step(t, carry):
        g = gates_ref[t] + jnp.dot(
            h_sc[...], whh_t_ref[...], preferred_element_type=jnp.float32
        )
        i_g = jax.nn.sigmoid(g[:, 0 * H:1 * H])
        f_g = jax.nn.sigmoid(g[:, 1 * H:2 * H])
        g_g = jnp.tanh(g[:, 2 * H:3 * H])
        o_g = jax.nn.sigmoid(g[:, 3 * H:4 * H])
        c_new = f_g * c_sc[...] + i_g * g_g
        h_new = o_g * jnp.tanh(c_new)
        c_sc[...] = c_new
        h_sc[...] = h_new
        o_ref[t] = h_new
        return carry

    # T is small and static: unroll so the LLO scheduler can interleave the
    # per-step MXU matmul, EUP sigmoid/tanh, and stores across iterations.
    lax.fori_loop(0, T, step, 0, unroll=True)


def bilstm(x, p, hidden=128):
    """Bidirectional LSTM (PyTorch semantics, zero initial state). x: (N, T, I)."""
    N, T, I = x.shape
    H = hidden
    Np = 8  # pad batch to one sublane group

    # Fused, lane-dense (1024-wide) gate pre-matmul for both directions.
    w_ih_cat = jnp.concatenate([p["w_ih_f"], p["w_ih_b"]], axis=0)        # (8H, I)
    b_cat = jnp.concatenate(
        [p["b_ih_f"] + p["b_hh_f"], p["b_ih_b"] + p["b_hh_b"]], axis=0)   # (8H,)
    gates = matmul_bias(x.reshape(N * T, I), w_ih_cat.T, b_cat)           # (N*T, 8H)
    gates = gates.reshape(N, T, 2, 4 * H).transpose(2, 1, 0, 3)           # (2, T, N, 4H)
    # Direction 1 (backward) consumes the time-reversed sequence.
    gates = jnp.stack([gates[0], gates[1][::-1]], axis=0)
    gates = jnp.pad(gates, ((0, 0), (0, 0), (0, Np - N), (0, 0)))         # (2, T, Np, 4H)
    whh_t = jnp.stack([p["w_hh_f"].T, p["w_hh_b"].T], axis=0)             # (2, H, 4H)

    hs = pl.pallas_call(
        _bilstm_kernel,
        out_shape=jax.ShapeDtypeStruct((2, T, Np, H), jnp.float32),
        grid=(2,),  # direction axis; "parallel" -> one TensorCore each on v7x
        in_specs=[
            pl.BlockSpec((None, T, Np, 4 * H), lambda d: (d, 0, 0, 0)),
            pl.BlockSpec((None, H, 4 * H), lambda d: (d, 0, 0)),
        ],
        out_specs=pl.BlockSpec((None, T, Np, H), lambda d: (d, 0, 0, 0)),
        scratch_shapes=[
            pltpu.VMEM((Np, H), jnp.float32),
            pltpu.VMEM((Np, H), jnp.float32),
        ],
        compiler_params=pltpu.CompilerParams(
            dimension_semantics=("parallel",),
            vmem_limit_bytes=_VMEM_LIMIT,
        ),
    )(gates.astype(jnp.float32), whh_t.astype(jnp.float32))

    h_f = hs[0, :, :N, :]        # (T, N, H), natural time order
    h_b = hs[1, ::-1, :N, :]     # reverse backward direction back to natural order
    h = jnp.concatenate([h_f, h_b], axis=-1)   # (T, N, 2H)
    return h.transpose(1, 0, 2)                # (N, T, 2H)


# ----------------------------------------------------------------------------
# Conv glue (im2col, NHWC) + the model forward
# ----------------------------------------------------------------------------
def _im2col_nhwc(x, kh, kw):
    # x: (N, H, W, C) -> patches: (N*Ho*Wo, kh*kw*C), feature order (kh, kw, c)
    N, H, W, C = x.shape
    Ho, Wo = H - kh + 1, W - kw + 1
    cols = []
    for i in range(kh):
        for j in range(kw):
            cols.append(x[:, i:i + Ho, j:j + Wo, :])
    p = jnp.stack(cols, axis=3)                   # (N, Ho, Wo, kh*kw, C)
    return p.reshape(N * Ho * Wo, kh * kw * C), Ho, Wo


def conv2d_valid_nhwc(x, w, b):
    """Valid conv on NHWC input; w in PyTorch layout (Cout, Cin, KH, KW)."""
    C_out, C_in, kh, kw = w.shape
    patches, Ho, Wo = _im2col_nhwc(x, kh, kw)
    # reorder weight to match the (kh, kw, cin) patch-feature order
    wm = w.transpose(2, 3, 1, 0).reshape(kh * kw * C_in, C_out)   # (K, Cout)
    out = matmul_bias(patches, wm, b)             # (N*Ho*Wo, Cout)
    N = x.shape[0]
    return out.reshape(N, Ho, Wo, C_out)          # stay NHWC


def whole_model_forward(x, p):
    # x: (N, 1, H, W) NCHW float32 -> NHWC once; stay NHWC through the convs.
    x = x.transpose(0, 2, 3, 1)
    x = conv2d_valid_nhwc(x, p["conv1_w"], p["conv1_b"])
    # conv2 padding='same' with kernel (5,3) -> pad H by (2,2), W by (1,1)
    x = jnp.pad(x, ((0, 0), (2, 2), (1, 1), (0, 0)))
    x = conv2d_valid_nhwc(x, p["conv2_w"], p["conv2_b"])
    x = maxpool_2x2_s21_nhwc(x)
    x = jnp.pad(x, ((0, 0), (0, 0), (0, 1), (0, 0)))   # ZeroPad2d((0,1,0,0))
    x = conv2d_valid_nhwc(x, p["conv3_w"], p["conv3_b"])
    x = conv2d_valid_nhwc(x, p["conv4_w"], p["conv4_b"])
    x = maxpool_2x2_s21_nhwc(x)
    x = jnp.pad(x, ((0, 0), (0, 0), (0, 1), (0, 0)))
    x = conv2d_valid_nhwc(x, p["conv5_w"], p["conv5_b"])   # (N, 80, Wseq, 128) NHWC

    # PyTorch: NCHW.permute(0,3,1,2) -> (N, W, C, H); reshape -> (N, W, C*H).
    # NHWC (N, H, W, C) -> (N, W, C, H) is transpose(0, 2, 3, 1); same feature order.
    N, Hh, T, C = x.shape
    x = x.transpose(0, 2, 3, 1).reshape(N, T, C * Hh)       # (N, T, 128*80)

    x = matmul_bias(x.reshape(N * T, C * Hh), p["fc1_w"].T, p["fc1_b"])   # (N*T, 88)
    x = matmul_bias(x, p["concat_w"].T, p["concat_b"]).reshape(N, T, 176)

    h = bilstm(x, p, hidden=128)                            # (N, T, 256)

    out = matmul_bias(h.reshape(N * T, 256), p["attack_fc_w"].T, p["attack_fc_b"])
    return out.reshape(N, T, 88)


# ----------------------------------------------------------------------------
# Deterministic parameter init (shapes mirror the PyTorch module)
# ----------------------------------------------------------------------------
def init_params(key):
    shapes = {
        "conv1_w": (8, 1, 5, 3),     "conv1_b": (8,),
        "conv2_w": (16, 8, 5, 3),    "conv2_b": (16,),
        "conv3_w": (32, 16, 5, 3),   "conv3_b": (32,),
        "conv4_w": (64, 32, 5, 3),   "conv4_b": (64,),
        "conv5_w": (128, 64, 5, 3),  "conv5_b": (128,),
        "fc1_w": (88, 80 * 128),     "fc1_b": (88,),
        "concat_w": (176, 88),       "concat_b": (176,),
        "w_ih_f": (512, 176), "w_hh_f": (512, 128),
        "b_ih_f": (512,),     "b_hh_f": (512,),
        "w_ih_b": (512, 176), "w_hh_b": (512, 128),
        "b_ih_b": (512,),     "b_hh_b": (512,),
        "attack_fc_w": (88, 256),    "attack_fc_b": (88,),
    }
    params = {}
    keys = jax.random.split(key, len(shapes))
    for k, (name, shp) in zip(keys, sorted(shapes.items())):
        params[name] = 0.05 * jax.random.normal(k, shp, dtype=jnp.float32)
    return params


if __name__ == "__main__":
    key = jax.random.PRNGKey(0)
    pkey, xkey = jax.random.split(key)
    params = init_params(pkey)
    # Input height 356 is dictated by fc1 = Linear(80*128, 88) (H shrinks to 80
    # through the conv/pool stack); width 16 -> sequence length 8 for the LSTM.
    x = jax.random.normal(xkey, (2, 1, 356, 16), dtype=jnp.float32)
    out = whole_model_forward(x, params)
    out = jax.block_until_ready(out)
    assert out.shape == (2, 8, 88), out.shape
    assert jnp.all(jnp.isfinite(out))
    print("KERNEL_OK")
</pallas_src>

<mosaic_0001>
module attributes {stable_mosaic.version = 11 : i64} {
  func.func @_matmul_bias_kernel(%arg0: i32, %arg1: memref<512x128xf32, #tpu.memory_space<vmem>>, %arg2: memref<128x128xf32, #tpu.memory_space<vmem>>, %arg3: memref<1x128xf32, #tpu.memory_space<vmem>>, %arg4: memref<512x128xf32, #tpu.memory_space<vmem>>) attributes {dimension_semantics = [#tpu.dimension_semantics<parallel>], iteration_bounds = array<i64: 20>, scalar_prefetch = 0 : i64, scratch_operands = 0 : i64, tpu.core_type = #tpu.core_type<tc>, window_params = [{transform_indices = @transform_0, window_bounds = array<i64: 512, 128>}, {pipeline_mode = #tpu.pipeline_mode<synchronous>, transform_indices = @transform_1, window_bounds = array<i64: 128, 128>}, {pipeline_mode = #tpu.pipeline_mode<synchronous>, transform_indices = @transform_2, window_bounds = array<i64: 1, 128>}, {transform_indices = @transform_3, window_bounds = array<i64: 512, 128>}]} {
    %c0 = arith.constant 0 : index
    %c0_0 = arith.constant 0 : index
    %0 = vector.load %arg1[%c0, %c0_0] : memref<512x128xf32, #tpu.memory_space<vmem>>, vector<512x128xf32>
    %c0_1 = arith.constant 0 : index
    %c0_2 = arith.constant 0 : index
    %1 = vector.load %arg2[%c0_1, %c0_2] : memref<128x128xf32, #tpu.memory_space<vmem>>, vector<128x128xf32>
    %cst = arith.constant dense<0.000000e+00> : vector<512x128xf32>
    %2 = tpu.matmul %0, %1, %cst {dimension_numbers = #tpu.dot_dimension_numbers<[1], [0], [0], [1], [0, 0, 1, 1], [], []>} : vector<512x128xf32>, vector<128x128xf32>, vector<512x128xf32> -> vector<512x128xf32>
    %c0_3 = arith.constant 0 : index
    %c0_4 = arith.constant 0 : index
    %3 = vector.load %arg3[%c0_3, %c0_4] : memref<1x128xf32, #tpu.memory_space<vmem>>, vector<1x128xf32>
    %4 = vector.broadcast %3 : vector<1x128xf32> to vector<512x128xf32>
    %5 = arith.addf %2, %4 : vector<512x128xf32>
    %c0_5 = arith.constant 0 : index
    %c0_6 = arith.constant 0 : index
    %6 = vector.load %arg4[%c0_5, %c0_6] : memref<512x128xf32, #tpu.memory_space<vmem>>, vector<512x128xf32>
    tpu.vector_store %arg4[%c0_5, %c0_6], %5 {strides = array<i32>} : memref<512x128xf32, #tpu.memory_space<vmem>>, vector<512x128xf32>,
    return
  }
  func.func @transform_0(%arg0: i32) -> (i32, i32) {
    %c0_i32 = arith.constant 0 : i32
    %c0_i32_0 = arith.constant 0 : i32
    return %arg0, %c0_i32 : i32, i32
  }
  func.func @transform_1(%arg0: i32) -> (i32, i32) {
    %c0_i32 = arith.constant 0 : i32
    %c0_i32_0 = arith.constant 0 : i32
    %c0_i32_1 = arith.constant 0 : i32
    return %c0_i32, %c0_i32_0 : i32, i32
  }
  func.func @transform_2(%arg0: i32) -> (i32, i32) {
    %c0_i32 = arith.constant 0 : i32
    %c0_i32_0 = arith.constant 0 : i32
    %c0_i32_1 = arith.constant 0 : i32
    return %c0_i32, %c0_i32_0 : i32, i32
  }
  func.func @transform_3(%arg0: i32) -> (i32, i32) {
    %c0_i32 = arith.constant 0 : i32
    %c0_i32_0 = arith.constant 0 : i32
    return %arg0, %c0_i32 : i32, i32
  }
}

</mosaic_0001>

<llo_original>
// kernel: tpu_custom_call.1
$region0: #{tpu_custom_call.1}
  #allocation0 [shape = 'u32[]', space=smem, size = 0x4, offset = 0x4, fixed_abs, tag = 'smem constant byte address 0x4 - core index']
  #allocation1 [shape = 'u32[144,128]{1,0:T(1,128)}', space=vmem, size = 0x12000, scoped, tag = 'internal scratch']
  %s0 = inlined_call_operand.hbm [shape: f32[10240,128], index: 0, kind: input, shape index: {}]
  %s1 = inlined_call_operand.hbm [shape: f32[128,128], index: 1, kind: input, shape index: {}]
  %s2 = inlined_call_operand.hbm [shape: f32[1,128], index: 2, kind: input, shape index: {}]
  %s3 = inlined_call_operand.hbm [shape: f32[10240,128], index: 3, kind: output, shape index: {}]
  %s4 = sld [smem:[#allocation0]]
  $region57: #{tpu_custom_call.1} parent=0
    _
  %s6 = ssub.s32 1, %s4
  %s7 = scalar_select 0, %s6, %s4
  $region1: #{tpu_custom_call.1} parent=0
    #allocation2 [shape = 'u8[524288]{0}', space=vmem, size = 0x80000, scoped, tag = 'input window, operand 0']
    #allocation3 [shape = 's32[2]{0}', space=sflag, size = 0x8, scoped, tag = 'scoped memory for tpu_custom_call.1']
    #allocation4 [shape = 's32[2]{0}', space=sflag, size = 0x8, scoped, tag = 'scoped memory for tpu_custom_call.1']
    #allocation5 [shape = 'u8[65536]{0}', space=vmem, size = 0x10000, scoped, tag = 'input window, operand 1, single buffered']
    #allocation6 [shape = 's32[1]{0}', space=sflag, size = 0x4, scoped, tag = 'scoped memory for tpu_custom_call.1']
    #allocation7 [shape = 'u8[512]{0}', space=vmem, size = 0x400, scoped, tag = 'input window, operand 2, single buffered']
    #allocation8 [shape = 'u8[524288]{0}', space=vmem, size = 0x80000, scoped, tag = 'output window, operand 0']
    %8 = vsyncpa [#allocation3], 0
    %s9 = scalar_lea.sflag [#allocation3], 1
    %10 = vsyncpa %s9, 0
    %11 = vsyncpa [#allocation6], 0
    %12 = vsyncpa [#allocation4], 0
    %s13 = scalar_lea.sflag [#allocation4], 1
    %14 = vsyncpa %s13, 0
    loop: start=0, step=1, limit=22
    $region2: #{tpu_custom_call.1} parent=1 // loop_pre_header
      _
    $region3: #{tpu_custom_call.1} parent=1 // loop_header
      %s16 = sphi 0, %s20
      %p17 = scmp.ge.s32.totalorder %s16, 22
      %s26 = sphi 0, %s28
      %s29 = sphi 0, %s26
      %s30 = sphi 0, %s29
      %s46 = sphi 0, %s30
      %s50 = sphi 0, %s50
      %s52 = sphi 0, %s50
      %s53 = sphi 0, %s52
      %s67 = sphi 0, %s53
      %s71 = sphi 0, %s71
      %s73 = sphi 0, %s71
      %s74 = sphi 0, %s73
      %s88 = sphi 0, %s74
      %s94 = sphi 0, %s96
      %s97 = sphi 0, %s94
      %s98 = sphi 0, %s97
      %s114 = sphi 0, %s98
    $region4: #{tpu_custom_call.1} parent=1 // loop_header_branch
      %19 = sbr.rel (%p17) target = $region8
    $region5: #{tpu_custom_call.1} parent=1 // loop_body
      %s21 = ssub.s32 %s16, 1
      %s22 = ssub.s32 %s16, 2
      %s23 = sadd.s32 %s16, 1
      %s24 = ssub.s32 %s16, %s23
      %p25 = scmp.eq.s32.totalorder %s24, 0
      %s27 = sadd.s32 %s26, 1
      %s28 = scalar_select %p25, %s26, %s27
      %p31 = pneg %p25
      %p32 = scmp.eq.s32.totalorder %s16, 19
      %p33 = por %p31, %p32
      %p34 = scmp.ne.s32.totalorder %s26, %s29
      %p35 = scmp.eq.s32.totalorder %s16, 0
      %p36 = por %p34, %p35
      %p37 = scmp.ne.s32.totalorder %s26, %s29
      %p38 = scmp.eq.s32.totalorder %s21, 19
      %p39 = por %p37, %p38
      %p40 = scmp.ne.s32.totalorder %s29, %s30
      %p41 = scmp.eq.s32.totalorder %s21, 0
      %p42 = por %p40, %p41
      %p43 = scmp.ne.s32.totalorder %s29, %s30
      %p44 = scmp.eq.s32.totalorder %s22, 19
      %p45 = por %p43, %p44
      %p47 = scmp.ne.s32.totalorder %s30, %s46
      %p48 = scmp.eq.s32.totalorder %s22, 0
      %p49 = por %p47, %p48
      %s51 = sadd.s32 %s50, 1
      %p54 = scmp.eq.s32.totalorder %s16, 19
      %p55 = scmp.ne.s32.totalorder %s50, %s52
      %p56 = scmp.eq.s32.totalorder %s16, 0
      %p57 = por %p55, %p56
      %p58 = scmp.ne.s32.totalorder %s50, %s52
      %p59 = scmp.eq.s32.totalorder %s21, 19
      %p60 = por %p58, %p59
      %p61 = scmp.ne.s32.totalorder %s52, %s53
      %p62 = scmp.eq.s32.totalorder %s21, 0
      %p63 = por %p61, %p62
      %p64 = scmp.ne.s32.totalorder %s52, %s53
      %p65 = scmp.eq.s32.totalorder %s22, 19
      %p66 = por %p64, %p65
      %p68 = scmp.ne.s32.totalorder %s53, %s67
      %p69 = scmp.eq.s32.totalorder %s22, 0
      %p70 = por %p68, %p69
      %s72 = sadd.s32 %s71, 1
      %p75 = scmp.eq.s32.totalorder %s16, 19
      %p76 = scmp.ne.s32.totalorder %s71, %s73
      %p77 = scmp.eq.s32.totalorder %s16, 0
      %p78 = por %p76, %p77
      %p79 = scmp.ne.s32.totalorder %s71, %s73
      %p80 = scmp.eq.s32.totalorder %s21, 19
      %p81 = por %p79, %p80
      %p82 = scmp.ne.s32.totalorder %s73, %s74
      %p83 = scmp.eq.s32.totalorder %s21, 0
      %p84 = por %p82, %p83
      %p85 = scmp.ne.s32.totalorder %s73, %s74
      %p86 = scmp.eq.s32.totalorder %s22, 19
      %p87 = por %p85, %p86
      %p89 = scmp.ne.s32.totalorder %s74, %s88
      %p90 = scmp.eq.s32.totalorder %s22, 0
      %p91 = por %p89, %p90
      %s92 = ssub.s32 %s16, %s23
      %p93 = scmp.eq.s32.totalorder %s92, 0
      %s95 = sadd.s32 %s94, 1
      %s96 = scalar_select %p93, %s94, %s95
      %p99 = pneg %p93
      %p100 = scmp.eq.s32.totalorder %s16, 19
      %p101 = por %p99, %p100
      %p102 = scmp.ne.s32.totalorder %s94, %s97
      %p103 = scmp.eq.s32.totalorder %s16, 0
      %p104 = por %p102, %p103
      %p105 = scmp.ne.s32.totalorder %s94, %s97
      %p106 = scmp.eq.s32.totalorder %s21, 19
      %p107 = por %p105, %p106
      %p108 = scmp.ne.s32.totalorder %s97, %s98
      %p109 = scmp.eq.s32.totalorder %s21, 0
      %p110 = por %p108, %p109
      %p111 = scmp.ne.s32.totalorder %s97, %s98
      %p112 = scmp.eq.s32.totalorder %s22, 19
      %p113 = por %p111, %p112
      %p115 = scmp.ne.s32.totalorder %s98, %s114
      %p116 = scmp.eq.s32.totalorder %s22, 0
      %p117 = por %p115, %p116
      %p118 = scmp.le.s32.totalorder 1, %s16
      %p119 = scmp.lt.s32.totalorder %s16, 21
      %p120 = pnand %p118, %p119
      %p121 = pneg %p120
      // Predicated region
      $region9: #{tpu_custom_call.1} parent=5 // pred_check
        _
      $region10: #{tpu_custom_call.1} parent=5 // pred_check_branch
        %123 = sbr.rel (%p120) target = $region12
      $region11: #{tpu_custom_call.1} parent=5 // pred_region
        %s124 = ssub.s32 %s16, 1
        // Predicated region
        $region13: #{tpu_custom_call.1} parent=11 // pred_check
          %p125 = pneg %p63
        $region14: #{tpu_custom_call.1} parent=11 // pred_check_branch
          %127 = sbr.rel (%p125) target = $region16
        $region15: #{tpu_custom_call.1} parent=11 // pred_region
          %s129 = ssub.s32 2048, 2048
          %130 = vsyncadd [#allocation6], %s129
          %s131 = sshll.u32 [#allocation5], 4
          %s132 = int_to_ptr.vmem [resolvable:$true] %s131
          %137 = dma.hbm_to_vmem [thread:$0]  %s1, 2048, %s132, [#allocation6], 128, 128, 8
        $region16: #{tpu_custom_call.1} parent=11 // pred_fallthru
          _
        // Predicated region
        $region17: #{tpu_custom_call.1} parent=11 // pred_check
          %p138 = pneg %p84
        $region18: #{tpu_custom_call.1} parent=11 // pred_check_branch
          %140 = sbr.rel (%p138) target = $region20
        $region19: #{tpu_custom_call.1} parent=11 // pred_region
          %s142 = ssub.s32 16, 16
          %143 = vsyncadd [#allocation6], %s142
          %s145 = sshll.u32 [#allocation7], 4
          %s146 = int_to_ptr.vmem [resolvable:$true] %s145
          %148 = dma.hbm_to_vmem [thread:$0]  %s2, 16, %s146, [#allocation6]
        $region20: #{tpu_custom_call.1} parent=11 // pred_fallthru
          _
      $region12: #{tpu_custom_call.1} parent=5 // pred_fallthru
        _
      %p149 = scmp.lt.s32.totalorder %s16, 20
      // Predicated region
      $region21: #{tpu_custom_call.1} parent=5 // pred_check
        %p150 = pneg %p149
      $region22: #{tpu_custom_call.1} parent=5 // pred_check_branch
        %152 = sbr.rel (%p150) target = $region24
      $region23: #{tpu_custom_call.1} parent=5 // pred_region
        // Predicated region
        $region25: #{tpu_custom_call.1} parent=23 // pred_check
          %p153 = pneg %p36
        $region26: #{tpu_custom_call.1} parent=23 // pred_check_branch
          %155 = sbr.rel (%p153) target = $region28
        $region27: #{tpu_custom_call.1} parent=23 // pred_region
          %s156 = sand.u32 %s26, 1
          %s157 = scalar_lea.sflag [#allocation3], %s156
          %s158 = sand.u32 %s26, 1
          %s159 = smul.addr %s158, 512
          %s160 = scalar_lea.vmem [#allocation2], %s159
          %s161 = smul.u32 64, %s16
          %s163 = ssub.s32 8192, 8192
          %164 = vsyncadd %s157, %s163
          %s165 = smul.addr %s161, 128
          %s166 = scalar_lea.hbm %s0, %s165
          %s167 = sshll.u32 %s160, 4
          %s168 = int_to_ptr.vmem [resolvable:$true] %s167
          %173 = dma.hbm_to_vmem [thread:$0]  %s166, 8192, %s168, %s157, 128, 128, 8
        $region28: #{tpu_custom_call.1} parent=23 // pred_fallthru
          _
      $region24: #{tpu_custom_call.1} parent=5 // pred_fallthru
        _
      %p174 = scmp.le.s32.totalorder 1, %s16
      %p175 = scmp.lt.s32.totalorder %s16, 21
      %p176 = pnand %p174, %p175
      %p177 = pneg %p176
      // Predicated region
      $region29: #{tpu_custom_call.1} parent=5 // pred_check
        _
      $region30: #{tpu_custom_call.1} parent=5 // pred_check_branch
        %179 = sbr.rel (%p176) target = $region32
      $region31: #{tpu_custom_call.1} parent=5 // pred_region
        %s180 = ssub.s32 %s16, 1
        %s181 = sand.u32 %s29, 1
        %s182 = scalar_lea.sflag [#allocation3], %s181
        %s183 = sand.u32 %s29, 1
        %s184 = smul.addr %s183, 512
        %s185 = scalar_lea.vmem [#allocation2], %s184
        // Predicated region
        $region33: #{tpu_custom_call.1} parent=31 // pred_check
          %p186 = pneg %p42
        $region34: #{tpu_custom_call.1} parent=31 // pred_check_branch
          %188 = sbr.rel (%p186) target = $region36
        $region35: #{tpu_custom_call.1} parent=31 // pred_region
          %189 = dma.done %s182, 8192
        $region36: #{tpu_custom_call.1} parent=31 // pred_fallthru
          _
        // Predicated region
        $region37: #{tpu_custom_call.1} parent=31 // pred_check
          %p190 = pneg %p63
        $region38: #{tpu_custom_call.1} parent=31 // pred_check_branch
          %192 = sbr.rel (%p190) target = $region40
        $region39: #{tpu_custom_call.1} parent=31 // pred_region
          %193 = dma.done [#allocation6], 2048
        $region40: #{tpu_custom_call.1} parent=31 // pred_fallthru
          _
        // Predicated region
        $region41: #{tpu_custom_call.1} parent=31 // pred_check
          %p194 = pneg %p84
        $region42: #{tpu_custom_call.1} parent=31 // pred_check_branch
          %196 = sbr.rel (%p194) target = $region44
        $region43: #{tpu_custom_call.1} parent=31 // pred_region
          %197 = dma.done [#allocation6], 16
        $region44: #{tpu_custom_call.1} parent=31 // pred_fallthru
          _
        %s198 = sand.u32 %s29, 1
        %s199 = scalar_lea.sflag [#allocation3], %s198
        %s200 = sand.u32 %s29, 1
        %s201 = smul.addr %s200, 512
        %s202 = scalar_lea.vmem [#allocation2], %s201
        %p203 = pneg %p42
        %p204 = pneg %p39
        %p205 = pneg %p63
        %p206 = pneg %p60
        %p207 = pneg %p84
        %p208 = pneg %p81
        %p209 = pneg %p110
        %p210 = pneg %p107
        %s211 = sand.u32 %s97, 1
        %s212 = scalar_lea.sflag [#allocation4], %s211
        %s213 = sand.u32 %s97, 1
        %s214 = smul.addr %s213, 512
        %s215 = scalar_lea.vmem [#allocation8], %s214
        %s216 = smul.u32 64, %s21
        %s217 = smul.u32 64, %s21
        %v218 = vld [vmem:[%s185] sm:$0xff]
        %v219 = vld [vmem:[%s185 + $0x8] sm:$0xff]
        %v220 = vld [vmem:[%s185 + $0x10] sm:$0xff]
        %v221 = vld [vmem:[%s185 + $0x18] sm:$0xff]
        %v222 = vld [vmem:[%s185 + $0x20] sm:$0xff]
        %v223 = vld [vmem:[%s185 + $0x28] sm:$0xff]
        %v224 = vld [vmem:[%s185 + $0x30] sm:$0xff]
        %v225 = vld [vmem:[%s185 + $0x38] sm:$0xff]
        %v226 = vld [vmem:[%s185 + $0x40] sm:$0xff]
        %v227 = vld [vmem:[%s185 + $0x48] sm:$0xff]
        %v228 = vld [vmem:[%s185 + $0x50] sm:$0xff]
        %v229 = vld [vmem:[%s185 + $0x58] sm:$0xff]
        %v230 = vld [vmem:[%s185 + $0x60] sm:$0xff]
        %v231 = vld [vmem:[%s185 + $0x68] sm:$0xff]
        %v232 = vld [vmem:[%s185 + $0x70] sm:$0xff]
        %v233 = vld [vmem:[%s185 + $0x78] sm:$0xff]
        %v234 = vld [vmem:[%s185 + $0x80] sm:$0xff]
        %v235 = vld [vmem:[%s185 + $0x88] sm:$0xff]
        %v236 = vld [vmem:[%s185 + $0x90] sm:$0xff]
        %v237 = vld [vmem:[%s185 + $0x98] sm:$0xff]
        %v238 = vld [vmem:[%s185 + $0xa0] sm:$0xff]
        %v239 = vld [vmem:[%s185 + $0xa8] sm:$0xff]
        %v240 = vld [vmem:[%s185 + $0xb0] sm:$0xff]
        %v241 = vld [vmem:[%s185 + $0xb8] sm:$0xff]
        %v242 = vld [vmem:[%s185 + $0xc0] sm:$0xff]
        %v243 = vld [vmem:[%s185 + $0xc8] sm:$0xff]
        %v244 = vld [vmem:[%s185 + $0xd0] sm:$0xff]
        %v245 = vld [vmem:[%s185 + $0xd8] sm:$0xff]
        %v246 = vld [vmem:[%s185 + $0xe0] sm:$0xff]
        %v247 = vld [vmem:[%s185 + $0xe8] sm:$0xff]
        %v248 = vld [vmem:[%s185 + $0xf0] sm:$0xff]
        %v249 = vld [vmem:[%s185 + $0xf8] sm:$0xff]
        %v250 = vld [vmem:[%s185 + $0x100] sm:$0xff]
        %v251 = vld [vmem:[%s185 + $0x108] sm:$0xff]
        %v252 = vld [vmem:[%s185 + $0x110] sm:$0xff]
        %v253 = vld [vmem:[%s185 + $0x118] sm:$0xff]
        %v254 = vld [vmem:[%s185 + $0x120] sm:$0xff]
        %v255 = vld [vmem:[%s185 + $0x128] sm:$0xff]
        %v256 = vld [vmem:[%s185 + $0x130] sm:$0xff]
        %v257 = vld [vmem:[%s185 + $0x138] sm:$0xff]
        %v258 = vld [vmem:[%s185 + $0x140] sm:$0xff]
        %v259 = vld [vmem:[%s185 + $0x148] sm:$0xff]
        %v260 = vld [vmem:[%s185 + $0x150] sm:$0xff]
        %v261 = vld [vmem:[%s185 + $0x158] sm:$0xff]
        %v262 = vld [vmem:[%s185 + $0x160] sm:$0xff]
        %v263 = vld [vmem:[%s185 + $0x168] sm:$0xff]
        %v264 = vld [vmem:[%s185 + $0x170] sm:$0xff]
        %v265 = vld [vmem:[%s185 + $0x178] sm:$0xff]
        %v266 = vld [vmem:[%s185 + $0x180] sm:$0xff]
        %v267 = vld [vmem:[%s185 + $0x188] sm:$0xff]
        %v268 = vld [vmem:[%s185 + $0x190] sm:$0xff]
        %v269 = vld [vmem:[%s185 + $0x198] sm:$0xff]
        %v270 = vld [vmem:[%s185 + $0x1a0] sm:$0xff]
        %v271 = vld [vmem:[%s185 + $0x1a8] sm:$0xff]
        %v272 = vld [vmem:[%s185 + $0x1b0] sm:$0xff]
        %v273 = vld [vmem:[%s185 + $0x1b8] sm:$0xff]
        %v274 = vld [vmem:[%s185 + $0x1c0] sm:$0xff]
        %v275 = vld [vmem:[%s185 + $0x1c8] sm:$0xff]
        %v276 = vld [vmem:[%s185 + $0x1d0] sm:$0xff]
        %v277 = vld [vmem:[%s185 + $0x1d8] sm:$0xff]
        %v278 = vld [vmem:[%s185 + $0x1e0] sm:$0xff]
        %v279 = vld [vmem:[%s185 + $0x1e8] sm:$0xff]
        %v280 = vld [vmem:[%s185 + $0x1f0] sm:$0xff]
        %v281 = vld [vmem:[%s185 + $0x1f8] sm:$0xff]
        %v282 = vld [vmem:[#allocation5] sm:$0xff]
        %v283 = vld [vmem:[#allocation5 + $0x8] sm:$0xff]
        %v284 = vld [vmem:[#allocation5 + $0x10] sm:$0xff]
        %v285 = vld [vmem:[#allocation5 + $0x18] sm:$0xff]
        %v286 = vld [vmem:[#allocation5 + $0x20] sm:$0xff]
        %v287 = vld [vmem:[#allocation5 + $0x28] sm:$0xff]
        %v288 = vld [vmem:[#allocation5 + $0x30] sm:$0xff]
        %v289 = vld [vmem:[#allocation5 + $0x38] sm:$0xff]
        %v290 = vld [vmem:[#allocation5 + $0x40] sm:$0xff]
        %v291 = vld [vmem:[#allocation5 + $0x48] sm:$0xff]
        %v292 = vld [vmem:[#allocation5 + $0x50] sm:$0xff]
        %v293 = vld [vmem:[#allocation5 + $0x58] sm:$0xff]
        %v294 = vld [vmem:[#allocation5 + $0x60] sm:$0xff]
        %v295 = vld [vmem:[#allocation5 + $0x68] sm:$0xff]
        %v296 = vld [vmem:[#allocation5 + $0x70] sm:$0xff]
        %v297 = vld [vmem:[#allocation5 + $0x78] sm:$0xff]
        %v298 = vld [vmem:[#allocation7] sm:$0x1]
        %v300 = vlaneseq
        %v301 = vshrl.u32 %v300, 7
        %v302 = vsub.s32 0, %v301
        %v303 = vrot.slane %v298, %v302
        %305 = vmatprep.subr.mxu0 0.0
        %306 = vmatpush1.msra.mxu0 %v282
        %307 = vmatprep.subr.mxu0 0.0
        %308 = vmatpush1.msra.mxu0 %v283
        %309 = vmatprep.subr.mxu0 0.0
        %310 = vmatpush1.msra.mxu0 %v284
        %311 = vmatprep.subr.mxu0 0.0
        %312 = vmatpush1.msra.mxu0 %v285
        %313 = vmatprep.subr.mxu0 0.0
        %314 = vmatpush1.msra.mxu0 %v286
        %315 = vmatprep.subr.mxu0 0.0
        %316 = vmatpush1.msra.mxu0 %v287
        %317 = vmatprep.subr.mxu0 0.0
        %318 = vmatpush1.msra.mxu0 %v288
        %319 = vmatprep.subr.mxu0 0.0
        %320 = vmatpush1.msra.mxu0 %v289
        %321 = vmatprep.subr.mxu0 0.0
        %322 = vmatpush1.msra.mxu0 %v290
        %323 = vmatprep.subr.mxu0 0.0
        %324 = vmatpush1.msra.mxu0 %v291
        %325 = vmatprep.subr.mxu0 0.0
        %326 = vmatpush1.msra.mxu0 %v292
        %327 = vmatprep.subr.mxu0 0.0
        %328 = vmatpush1.msra.mxu0 %v293
        %329 = vmatprep.subr.mxu0 0.0
        %330 = vmatpush1.msra.mxu0 %v294
        %331 = vmatprep.subr.mxu0 0.0
        %332 = vmatpush1.msra.mxu0 %v295
        %333 = vmatprep.subr.mxu0 0.0
        %334 = vmatpush1.msra.mxu0 %v296
        %335 = vmatprep.subr.mxu0 0.0
        %336 = vmatpush1.msra.mxu0 %v297
        %337 = vmatprep.subr.mxu0 0.0
        %338 = vmatpush1.msra.mxu0 0.0
        %339 = vmatprep.subr.mxu0 0.0
        %340 = vmatpush1.msra.mxu0 0.0
        %341 = vmatprep.subr.mxu0 0.0
        %342 = vmatpush1.msra.mxu0 0.0
        %343 = vmatprep.subr.mxu0 0.0
        %344 = vmatpush1.msra.mxu0 0.0
        %345 = vmatprep.subr.mxu0 0.0
        %346 = vmatpush1.msra.mxu0 0.0
        %347 = vmatprep.subr.mxu0 0.0
        %348 = vmatpush1.msra.mxu0 0.0
        %349 = vmatprep.subr.mxu0 0.0
        %350 = vmatpush1.msra.mxu0 0.0
        %351 = vmatprep.subr.mxu0 0.0
        %352 = vmatpush1.msra.mxu0 0.0
        %353 = vmatprep.subr.mxu0 0.0
        %354 = vmatpush1.msra.mxu0 0.0
        %355 = vmatprep.subr.mxu0 0.0
        %356 = vmatpush1.msra.mxu0 0.0
        %357 = vmatprep.subr.mxu0 0.0
        %358 = vmatpush1.msra.mxu0 0.0
        %359 = vmatprep.subr.mxu0 0.0
        %360 = vmatpush1.msra.mxu0 0.0
        %361 = vmatprep.subr.mxu0 0.0
        %362 = vmatpush1.msra.mxu0 0.0
        %363 = vmatprep.subr.mxu0 0.0
        %364 = vmatpush1.msra.mxu0 0.0
        %365 = vmatprep.subr.mxu0 0.0
        %366 = vmatpush1.msra.mxu0 0.0
        %367 = vmatprep.subr.mxu0 0.0
        %368 = vmatpush1.msra.mxu0 0.0
        %369 = vmatprep.mubr.f32.mxu0 0.0
        %370 = vmatmul.mubr.f32.gmra.mrb[0].mxu0 %v218
        %v371 = vpop.f32.mrb[0].mxu0
        %v372 = vadd.f32 %v303, %v371
        %v373 = vpop.f32.mrb[0].mxu0
        %374 = vmatprep.mubr.f32.mxu0 0.0
        %375 = vmatmul.mubr.f32.gmra.mrb[0].mxu0 %v219
        %v376 = vpop.f32.mrb[0].mxu0
        %v377 = vadd.f32 %v303, %v376
        %v378 = vpop.f32.mrb[0].mxu0
        %379 = vmatprep.mubr.f32.mxu0 0.0
        %380 = vmatmul.mubr.f32.gmra.mrb[0].mxu0 %v220
        %v381 = vpop.f32.mrb[0].mxu0
        %v382 = vadd.f32 %v303, %v381
        %v383 = vpop.f32.mrb[0].mxu0
        %384 = vmatprep.mubr.f32.mxu0 0.0
        %385 = vmatmul.mubr.f32.gmra.mrb[0].mxu0 %v221
        %v386 = vpop.f32.mrb[0].mxu0
        %v387 = vadd.f32 %v303, %v386
        %v388 = vpop.f32.mrb[0].mxu0
        %389 = vmatprep.mubr.f32.mxu0 0.0
        %390 = vmatmul.mubr.f32.gmra.mrb[0].mxu0 %v222
        %v391 = vpop.f32.mrb[0].mxu0
        %v392 = vadd.f32 %v303, %v391
        %v393 = vpop.f32.mrb[0].mxu0
        %394 = vmatprep.mubr.f32.mxu0 0.0
        %395 = vmatmul.mubr.f32.gmra.mrb[0].mxu0 %v223
        %v396 = vpop.f32.mrb[0].mxu0
        %v397 = vadd.f32 %v303, %v396
        %v398 = vpop.f32.mrb[0].mxu0
        %399 = vmatprep.mubr.f32.mxu0 0.0
        %400 = vmatmul.mubr.f32.gmra.mrb[0].mxu0 %v224
        %v401 = vpop.f32.mrb[0].mxu0
        %v402 = vadd.f32 %v303, %v401
        %v403 = vpop.f32.mrb[0].mxu0
        %404 = vmatprep.mubr.f32.mxu0 0.0
        %405 = vmatmul.mubr.f32.gmra.mrb[0].mxu0 %v225
        %v406 = vpop.f32.mrb[0].mxu0
        %v407 = vadd.f32 %v303, %v406
        %v408 = vpop.f32.mrb[0].mxu0
        %409 = vmatprep.mubr.f32.mxu0 0.0
        %410 = vmatmul.mubr.f32.gmra.mrb[0].mxu0 %v226
        %v411 = vpop.f32.mrb[0].mxu0
        %v412 = vadd.f32 %v303, %v411
        %v413 = vpop.f32.mrb[0].mxu0
        %414 = vmatprep.mubr.f32.mxu0 0.0
        %415 = vmatmul.mubr.f32.gmra.mrb[0].mxu0 %v227
        %v416 = vpop.f32.mrb[0].mxu0
        %v417 = vadd.f32 %v303, %v416
        %v418 = vpop.f32.mrb[0].mxu0
        %419 = vmatprep.mubr.f32.mxu0 0.0
        %420 = vmatmul.mubr.f32.gmra.mrb[0].mxu0 %v228
        %v421 = vpop.f32.mrb[0].mxu0
        %v422 = vadd.f32 %v303, %v421
        %v423 = vpop.f32.mrb[0].mxu0
        %424 = vmatprep.mubr.f32.mxu0 0.0
        %425 = vmatmul.mubr.f32.gmra.mrb[0].mxu0 %v229
        %v426 = vpop.f32.mrb[0].mxu0
        %v427 = vadd.f32 %v303, %v426
        %v428 = vpop.f32.mrb[0].mxu0
        %429 = vmatprep.mubr.f32.mxu0 0.0
        %430 = vmatmul.mubr.f32.gmra.mrb[0].mxu0 %v230
        %v431 = vpop.f32.mrb[0].mxu0
        %v432 = vadd.f32 %v303, %v431
        %v433 = vpop.f32.mrb[0].mxu0
        %434 = vmatprep.mubr.f32.mxu0 0.0
        %435 = vmatmul.mubr.f32.gmra.mrb[0].mxu0 %v231
        %v436 = vpop.f32.mrb[0].mxu0
        %v437 = vadd.f32 %v303, %v436
        %v438 = vpop.f32.mrb[0].mxu0
        %439 = vmatprep.mubr.f32.mxu0 0.0
        %440 = vmatmul.mubr.f32.gmra.mrb[0].mxu0 %v232
        %v441 = vpop.f32.mrb[0].mxu0
        %v442 = vadd.f32 %v303, %v441
        %v443 = vpop.f32.mrb[0].mxu0
        %444 = vmatprep.mubr.f32.mxu0 0.0
        %445 = vmatmul.mubr.f32.gmra.mrb[0].mxu0 %v233
        %v446 = vpop.f32.mrb[0].mxu0
        %v447 = vadd.f32 %v303, %v446
        %v448 = vpop.f32.mrb[0].mxu0
        %449 = vmatprep.mubr.f32.mxu0 0.0
        %450 = vmatmul.mubr.f32.gmra.mrb[0].mxu0 %v234
        %v451 = vpop.f32.mrb[0].mxu0
        %v452 = vadd.f32 %v303, %v451
        %v453 = vpop.f32.mrb[0].mxu0
        %454 = vmatprep.mubr.f32.mxu0 0.0
        %455 = vmatmul.mubr.f32.gmra.mrb[0].mxu0 %v235
        %v456 = vpop.f32.mrb[0].mxu0
        %v457 = vadd.f32 %v303, %v456
        %v458 = vpop.f32.mrb[0].mxu0
        %459 = vmatprep.mubr.f32.mxu0 0.0
        %460 = vmatmul.mubr.f32.gmra.mrb[0].mxu0 %v236
        %v461 = vpop.f32.mrb[0].mxu0
        %v462 = vadd.f32 %v303, %v461
        %v463 = vpop.f32.mrb[0].mxu0
        %464 = vmatprep.mubr.f32.mxu0 0.0
        %465 = vmatmul.mubr.f32.gmra.mrb[0].mxu0 %v237
        %v466 = vpop.f32.mrb[0].mxu0
        %v467 = vadd.f32 %v303, %v466
        %v468 = vpop.f32.mrb[0].mxu0
        %469 = vmatprep.mubr.f32.mxu0 0.0
        %470 = vmatmul.mubr.f32.gmra.mrb[0].mxu0 %v238
        %v471 = vpop.f32.mrb[0].mxu0
        %v472 = vadd.f32 %v303, %v471
        %v473 = vpop.f32.mrb[0].mxu0
        %474 = vmatprep.mubr.f32.mxu0 0.0
        %475 = vmatmul.mubr.f32.gmra.mrb[0].mxu0 %v239
        %v476 = vpop.f32.mrb[0].mxu0
        %v477 = vadd.f32 %v303, %v476
        %v478 = vpop.f32.mrb[0].mxu0
        %479 = vmatprep.mubr.f32.mxu0 0.0
        %480 = vmatmul.mubr.f32.gmra.mrb[0].mxu0 %v240
        %v481 = vpop.f32.mrb[0].mxu0
        %v482 = vadd.f32 %v303, %v481
        %v483 = vpop.f32.mrb[0].mxu0
        %484 = vmatprep.mubr.f32.mxu0 0.0
        %485 = vmatmul.mubr.f32.gmra.mrb[0].mxu0 %v241
        %v486 = vpop.f32.mrb[0].mxu0
        %v487 = vadd.f32 %v303, %v486
        %v488 = vpop.f32.mrb[0].mxu0
        %489 = vmatprep.mubr.f32.mxu0 0.0
        %490 = vmatmul.mubr.f32.gmra.mrb[0].mxu0 %v242
        %v491 = vpop.f32.mrb[0].mxu0
        %v492 = vadd.f32 %v303, %v491
        %v493 = vpop.f32.mrb[0].mxu0
        %494 = vmatprep.mubr.f32.mxu0 0.0
        %495 = vmatmul.mubr.f32.gmra.mrb[0].mxu0 %v243
        %v496 = vpop.f32.mrb[0].mxu0
        %v497 = vadd.f32 %v303, %v496
        %v498 = vpop.f32.mrb[0].mxu0
        %499 = vmatprep.mubr.f32.mxu0 0.0
        %500 = vmatmul.mubr.f32.gmra.mrb[0].mxu0 %v244
        %v501 = vpop.f32.mrb[0].mxu0
        %v502 = vadd.f32 %v303, %v501
        %v503 = vpop.f32.mrb[0].mxu0
        %504 = vmatprep.mubr.f32.mxu0 0.0
        %505 = vmatmul.mubr.f32.gmra.mrb[0].mxu0 %v245
        %v506 = vpop.f32.mrb[0].mxu0
        %v507 = vadd.f32 %v303, %v506
        %v508 = vpop.f32.mrb[0].mxu0
        %509 = vmatprep.mubr.f32.mxu0 0.0
        %510 = vmatmul.mubr.f32.gmra.mrb[0].mxu0 %v246
        %v511 = vpop.f32.mrb[0].mxu0
        %v512 = vadd.f32 %v303, %v511
        %v513 = vpop.f32.mrb[0].mxu0
        %514 = vmatprep.mubr.f32.mxu0 0.0
        %515 = vmatmul.mubr.f32.gmra.mrb[0].mxu0 %v247
        %v516 = vpop.f32.mrb[0].mxu0
        %v517 = vadd.f32 %v303, %v516
        %v518 = vpop.f32.mrb[0].mxu0
        %519 = vmatprep.mubr.f32.mxu0 0.0
        %520 = vmatmul.mubr.f32.gmra.mrb[0].mxu0 %v248
        %v521 = vpop.f32.mrb[0].mxu0
        %v522 = vadd.f32 %v303, %v521
        %v523 = vpop.f32.mrb[0].mxu0
        %524 = vmatprep.mubr.f32.mxu0 0.0
        %525 = vmatmul.mubr.f32.gmra.mrb[0].mxu0 %v249
        %v526 = vpop.f32.mrb[0].mxu0
        %v527 = vadd.f32 %v303, %v526
        %v528 = vpop.f32.mrb[0].mxu0
        %529 = vmatprep.mubr.f32.mxu0 0.0
        %530 = vmatmul.mubr.f32.gmra.mrb[0].mxu0 %v250
        %v531 = vpop.f32.mrb[0].mxu0
        %v532 = vadd.f32 %v303, %v531
        %v533 = vpop.f32.mrb[0].mxu0
        %534 = vmatprep.mubr.f32.mxu0 0.0
        %535 = vmatmul.mubr.f32.gmra.mrb[0].mxu0 %v251
        %v536 = vpop.f32.mrb[0].mxu0
        %v537 = vadd.f32 %v303, %v536
        %v538 = vpop.f32.mrb[0].mxu0
        %539 = vmatprep.mubr.f32.mxu0 0.0
        %540 = vmatmul.mubr.f32.gmra.mrb[0].mxu0 %v252
        %v541 = vpop.f32.mrb[0].mxu0
        %v542 = vadd.f32 %v303, %v541
        %v543 = vpop.f32.mrb[0].mxu0
        %544 = vmatprep.mubr.f32.mxu0 0.0
        %545 = vmatmul.mubr.f32.gmra.mrb[0].mxu0 %v253
        %v546 = vpop.f32.mrb[0].mxu0
        %v547 = vadd.f32 %v303, %v546
        %v548 = vpop.f32.mrb[0].mxu0
        %549 = vmatprep.mubr.f32.mxu0 0.0
        %550 = vmatmul.mubr.f32.gmra.mrb[0].mxu0 %v254
        %v551 = vpop.f32.mrb[0].mxu0
        %v552 = vadd.f32 %v303, %v551
        %v553 = vpop.f32.mrb[0].mxu0
        %554 = vmatprep.mubr.f32.mxu0 0.0
        %555 = vmatmul.mubr.f32.gmra.mrb[0].mxu0 %v255
        %v556 = vpop.f32.mrb[0].mxu0
        %v557 = vadd.f32 %v303, %v556
        %v558 = vpop.f32.mrb[0].mxu0
        %559 = vmatprep.mubr.f32.mxu0 0.0
        %560 = vmatmul.mubr.f32.gmra.mrb[0].mxu0 %v256
        %v561 = vpop.f32.mrb[0].mxu0
        %v562 = vadd.f32 %v303, %v561
        %v563 = vpop.f32.mrb[0].mxu0
        %564 = vmatprep.mubr.f32.mxu0 0.0
        %565 = vmatmul.mubr.f32.gmra.mrb[0].mxu0 %v257
        %v566 = vpop.f32.mrb[0].mxu0
        %v567 = vadd.f32 %v303, %v566
        %v568 = vpop.f32.mrb[0].mxu0
        %569 = vmatprep.mubr.f32.mxu0 0.0
        %570 = vmatmul.mubr.f32.gmra.mrb[0].mxu0 %v258
        %v571 = vpop.f32.mrb[0].mxu0
        %v572 = vadd.f32 %v303, %v571
        %v573 = vpop.f32.mrb[0].mxu0
        %574 = vmatprep.mubr.f32.mxu0 0.0
        %575 = vmatmul.mubr.f32.gmra.mrb[0].mxu0 %v259
        %v576 = vpop.f32.mrb[0].mxu0
        %v577 = vadd.f32 %v303, %v576
        %v578 = vpop.f32.mrb[0].mxu0
        %579 = vmatprep.mubr.f32.mxu0 0.0
        %580 = vmatmul.mubr.f32.gmra.mrb[0].mxu0 %v260
        %v581 = vpop.f32.mrb[0].mxu0
        %v582 = vadd.f32 %v303, %v581
        %v583 = vpop.f32.mrb[0].mxu0
        %584 = vmatprep.mubr.f32.mxu0 0.0
        %585 = vmatmul.mubr.f32.gmra.mrb[0].mxu0 %v261
        %v586 = vpop.f32.mrb[0].mxu0
        %v587 = vadd.f32 %v303, %v586
        %v588 = vpop.f32.mrb[0].mxu0
        %589 = vmatprep.mubr.f32.mxu0 0.0
        %590 = vmatmul.mubr.f32.gmra.mrb[0].mxu0 %v262
        %v591 = vpop.f32.mrb[0].mxu0
        %v592 = vadd.f32 %v303, %v591
        %v593 = vpop.f32.mrb[0].mxu0
        %594 = vmatprep.mubr.f32.mxu0 0.0
        %595 = vmatmul.mubr.f32.gmra.mrb[0].mxu0 %v263
        %v596 = vpop.f32.mrb[0].mxu0
        %v597 = vadd.f32 %v303, %v596
        %v598 = vpop.f32.mrb[0].mxu0
        %599 = vmatprep.mubr.f32.mxu0 0.0
        %600 = vmatmul.mubr.f32.gmra.mrb[0].mxu0 %v264
        %v601 = vpop.f32.mrb[0].mxu0
        %v602 = vadd.f32 %v303, %v601
        %v603 = vpop.f32.mrb[0].mxu0
        %604 = vmatprep.mubr.f32.mxu0 0.0
        %605 = vmatmul.mubr.f32.gmra.mrb[0].mxu0 %v265
        %v606 = vpop.f32.mrb[0].mxu0
        %v607 = vadd.f32 %v303, %v606
        %v608 = vpop.f32.mrb[0].mxu0
        %609 = vmatprep.mubr.f32.mxu0 0.0
        %610 = vmatmul.mubr.f32.gmra.mrb[0].mxu0 %v266
        %v611 = vpop.f32.mrb[0].mxu0
        %v612 = vadd.f32 %v303, %v611
        %v613 = vpop.f32.mrb[0].mxu0
        %614 = vmatprep.mubr.f32.mxu0 0.0
        %615 = vmatmul.mubr.f32.gmra.mrb[0].mxu0 %v267
        %v616 = vpop.f32.mrb[0].mxu0
        %v617 = vadd.f32 %v303, %v616
        %v618 = vpop.f32.mrb[0].mxu0
        %619 = vmatprep.mubr.f32.mxu0 0.0
        %620 = vmatmul.mubr.f32.gmra.mrb[0].mxu0 %v268
        %v621 = vpop.f32.mrb[0].mxu0
        %v622 = vadd.f32 %v303, %v621
        %v623 = vpop.f32.mrb[0].mxu0
        %624 = vmatprep.mubr.f32.mxu0 0.0
        %625 = vmatmul.mubr.f32.gmra.mrb[0].mxu0 %v269
        %v626 = vpop.f32.mrb[0].mxu0
        %v627 = vadd.f32 %v303, %v626
        %v628 = vpop.f32.mrb[0].mxu0
        %629 = vmatprep.mubr.f32.mxu0 0.0
        %630 = vmatmul.mubr.f32.gmra.mrb[0].mxu0 %v270
        %v631 = vpop.f32.mrb[0].mxu0
        %v632 = vadd.f32 %v303, %v631
        %v633 = vpop.f32.mrb[0].mxu0
        %634 = vmatprep.mubr.f32.mxu0 0.0
        %635 = vmatmul.mubr.f32.gmra.mrb[0].mxu0 %v271
        %v636 = vpop.f32.mrb[0].mxu0
        %v637 = vadd.f32 %v303, %v636
        %v638 = vpop.f32.mrb[0].mxu0
        %639 = vmatprep.mubr.f32.mxu0 0.0
        %640 = vmatmul.mubr.f32.gmra.mrb[0].mxu0 %v272
        %v641 = vpop.f32.mrb[0].mxu0
        %v642 = vadd.f32 %v303, %v641
        %v643 = vpop.f32.mrb[0].mxu0
        %644 = vmatprep.mubr.f32.mxu0 0.0
        %645 = vmatmul.mubr.f32.gmra.mrb[0].mxu0 %v273
        %v646 = vpop.f32.mrb[0].mxu0
        %v647 = vadd.f32 %v303, %v646
        %v648 = vpop.f32.mrb[0].mxu0
        %649 = vmatprep.mubr.f32.mxu0 0.0
        %650 = vmatmul.mubr.f32.gmra.mrb[0].mxu0 %v274
        %v651 = vpop.f32.mrb[0].mxu0
        %v652 = vadd.f32 %v303, %v651
        %v653 = vpop.f32.mrb[0].mxu0
        %654 = vmatprep.mubr.f32.mxu0 0.0
        %655 = vmatmul.mubr.f32.gmra.mrb[0].mxu0 %v275
        %v656 = vpop.f32.mrb[0].mxu0
        %v657 = vadd.f32 %v303, %v656
        %v658 = vpop.f32.mrb[0].mxu0
        %659 = vmatprep.mubr.f32.mxu0 0.0
        %660 = vmatmul.mubr.f32.gmra.mrb[0].mxu0 %v276
        %v661 = vpop.f32.mrb[0].mxu0
        %v662 = vadd.f32 %v303, %v661
        %v663 = vpop.f32.mrb[0].mxu0
        %664 = vmatprep.mubr.f32.mxu0 0.0
        %665 = vmatmul.mubr.f32.gmra.mrb[0].mxu0 %v277
        %v666 = vpop.f32.mrb[0].mxu0
        %v667 = vadd.f32 %v303, %v666
        %v668 = vpop.f32.mrb[0].mxu0
        %669 = vmatprep.mubr.f32.mxu0 0.0
        %670 = vmatmul.mubr.f32.gmra.mrb[0].mxu0 %v278
        %v671 = vpop.f32.mrb[0].mxu0
        %v672 = vadd.f32 %v303, %v671
        %v673 = vpop.f32.mrb[0].mxu0
        %674 = vmatprep.mubr.f32.mxu0 0.0
        %675 = vmatmul.mubr.f32.gmra.mrb[0].mxu0 %v279
        %v676 = vpop.f32.mrb[0].mxu0
        %v677 = vadd.f32 %v303, %v676
        %v678 = vpop.f32.mrb[0].mxu0
        %679 = vmatprep.mubr.f32.mxu0 0.0
        %680 = vmatmul.mubr.f32.gmra.mrb[0].mxu0 %v280
        %v681 = vpop.f32.mrb[0].mxu0
        %v682 = vadd.f32 %v303, %v681
        %v683 = vpop.f32.mrb[0].mxu0
        %684 = vmatprep.mubr.f32.mxu0 0.0
        %685 = vmatmul.mubr.f32.gmra.mrb[0].mxu0 %v281
        %v686 = vpop.f32.mrb[0].mxu0
        %v687 = vadd.f32 %v303, %v686
        %v688 = vpop.f32.mrb[0].mxu0
        %689 = vdwg.mxu0
        %690 = vst [vmem:[%s215] sm:$0xff] %v372
        %691 = vst [vmem:[%s215 + $0x8] sm:$0xff] %v377
        %692 = vst [vmem:[%s215 + $0x10] sm:$0xff] %v382
        %693 = vst [vmem:[%s215 + $0x18] sm:$0xff] %v387
        %694 = vst [vmem:[%s215 + $0x20] sm:$0xff] %v392
        %695 = vst [vmem:[%s215 + $0x28] sm:$0xff] %v397
        %696 = vst [vmem:[%s215 + $0x30] sm:$0xff] %v402
        %697 = vst [vmem:[%s215 + $0x38] sm:$0xff] %v407
        %698 = vst [vmem:[%s215 + $0x40] sm:$0xff] %v412
        %699 = vst [vmem:[%s215 + $0x48] sm:$0xff] %v417
        %700 = vst [vmem:[%s215 + $0x50] sm:$0xff] %v422
        %701 = vst [vmem:[%s215 + $0x58] sm:$0xff] %v427
        %702 = vst [vmem:[%s215 + $0x60] sm:$0xff] %v432
        %703 = vst [vmem:[%s215 + $0x68] sm:$0xff] %v437
        %704 = vst [vmem:[%s215 + $0x70] sm:$0xff] %v442
        %705 = vst [vmem:[%s215 + $0x78] sm:$0xff] %v447
        %706 = vst [vmem:[%s215 + $0x80] sm:$0xff] %v452
        %707 = vst [vmem:[%s215 + $0x88] sm:$0xff] %v457
        %708 = vst [vmem:[%s215 + $0x90] sm:$0xff] %v462
        %709 = vst [vmem:[%s215 + $0x98] sm:$0xff] %v467
        %710 = vst [vmem:[%s215 + $0xa0] sm:$0xff] %v472
        %711 = vst [vmem:[%s215 + $0xa8] sm:$0xff] %v477
        %712 = vst [vmem:[%s215 + $0xb0] sm:$0xff] %v482
        %713 = vst [vmem:[%s215 + $0xb8] sm:$0xff] %v487
        %714 = vst [vmem:[%s215 + $0xc0] sm:$0xff] %v492
        %715 = vst [vmem:[%s215 + $0xc8] sm:$0xff] %v497
        %716 = vst [vmem:[%s215 + $0xd0] sm:$0xff] %v502
        %717 = vst [vmem:[%s215 + $0xd8] sm:$0xff] %v507
        %718 = vst [vmem:[%s215 + $0xe0] sm:$0xff] %v512
        %719 = vst [vmem:[%s215 + $0xe8] sm:$0xff] %v517
        %720 = vst [vmem:[%s215 + $0xf0] sm:$0xff] %v522
        %721 = vst [vmem:[%s215 + $0xf8] sm:$0xff] %v527
        %722 = vst [vmem:[%s215 + $0x100] sm:$0xff] %v532
        %723 = vst [vmem:[%s215 + $0x108] sm:$0xff] %v537
        %724 = vst [vmem:[%s215 + $0x110] sm:$0xff] %v542
        %725 = vst [vmem:[%s215 + $0x118] sm:$0xff] %v547
        %726 = vst [vmem:[%s215 + $0x120] sm:$0xff] %v552
        %727 = vst [vmem:[%s215 + $0x128] sm:$0xff] %v557
        %728 = vst [vmem:[%s215 + $0x130] sm:$0xff] %v562
        %729 = vst [vmem:[%s215 + $0x138] sm:$0xff] %v567
        %730 = vst [vmem:[%s215 + $0x140] sm:$0xff] %v572
        %731 = vst [vmem:[%s215 + $0x148] sm:$0xff] %v577
        %732 = vst [vmem:[%s215 + $0x150] sm:$0xff] %v582
        %733 = vst [vmem:[%s215 + $0x158] sm:$0xff] %v587
        %734 = vst [vmem:[%s215 + $0x160] sm:$0xff] %v592
        %735 = vst [vmem:[%s215 + $0x168] sm:$0xff] %v597
        %736 = vst [vmem:[%s215 + $0x170] sm:$0xff] %v602
        %737 = vst [vmem:[%s215 + $0x178] sm:$0xff] %v607
        %738 = vst [vmem:[%s215 + $0x180] sm:$0xff] %v612
        %739 = vst [vmem:[%s215 + $0x188] sm:$0xff] %v617
        %740 = vst [vmem:[%s215 + $0x190] sm:$0xff] %v622
        %741 = vst [vmem:[%s215 + $0x198] sm:$0xff] %v627
        %742 = vst [vmem:[%s215 + $0x1a0] sm:$0xff] %v632
        %743 = vst [vmem:[%s215 + $0x1a8] sm:$0xff] %v637
        %744 = vst [vmem:[%s215 + $0x1b0] sm:$0xff] %v642
        %745 = vst [vmem:[%s215 + $0x1b8] sm:$0xff] %v647
        %746 = vst [vmem:[%s215 + $0x1c0] sm:$0xff] %v652
        %747 = vst [vmem:[%s215 + $0x1c8] sm:$0xff] %v657
        %748 = vst [vmem:[%s215 + $0x1d0] sm:$0xff] %v662
        %749 = vst [vmem:[%s215 + $0x1d8] sm:$0xff] %v667
        %750 = vst [vmem:[%s215 + $0x1e0] sm:$0xff] %v672
        %751 = vst [vmem:[%s215 + $0x1e8] sm:$0xff] %v677
        %752 = vst [vmem:[%s215 + $0x1f0] sm:$0xff] %v682
        %753 = vst [vmem:[%s215 + $0x1f8] sm:$0xff] %v687
        %s754 = sand.u32 %s97, 1
        %s755 = scalar_lea.sflag [#allocation4], %s754
        %s756 = sand.u32 %s97, 1
        %s757 = smul.addr %s756, 512
        %s758 = scalar_lea.vmem [#allocation8], %s757
        // Predicated region
        $region45: #{tpu_custom_call.1} parent=31 // pred_check
          %p759 = pneg %p107
        $region46: #{tpu_custom_call.1} parent=31 // pred_check_branch
          %761 = sbr.rel (%p759) target = $region48
        $region47: #{tpu_custom_call.1} parent=31 // pred_region
          %s762 = smul.u32 64, %s21
          %s764 = ssub.s32 8192, 8192
          %765 = vsyncadd %s755, %s764
          %s766 = smul.addr %s762, 128
          %s767 = scalar_lea.hbm %s3, %s766
          %s768 = sshll.u32 %s758, 4
          %s769 = int_to_ptr.vmem [resolvable:$true] %s768
          %774 = dma.vmem_to_hbm [thread:$0]  %s769, 8192, %s767, %s755, 128, 128, 8
        $region48: #{tpu_custom_call.1} parent=31 // pred_fallthru
          _
      $region32: #{tpu_custom_call.1} parent=5 // pred_fallthru
        _
      %p775 = scmp.le.s32.totalorder 2, %s16
      // Predicated region
      $region49: #{tpu_custom_call.1} parent=5 // pred_check
        %p776 = pneg %p775
      $region50: #{tpu_custom_call.1} parent=5 // pred_check_branch
        %778 = sbr.rel (%p776) target = $region52
      $region51: #{tpu_custom_call.1} parent=5 // pred_region
        %s779 = ssub.s32 %s16, 2
        // Predicated region
        $region53: #{tpu_custom_call.1} parent=51 // pred_check
          %p780 = pneg %p113
        $region54: #{tpu_custom_call.1} parent=51 // pred_check_branch
          %782 = sbr.rel (%p780) target = $region56
        $region55: #{tpu_custom_call.1} parent=51 // pred_region
          %s783 = sand.u32 %s98, 1
          %s784 = scalar_lea.sflag [#allocation4], %s783
          %s785 = sand.u32 %s98, 1
          %s786 = smul.addr %s785, 512
          %s787 = scalar_lea.vmem [#allocation8], %s786
          %788 = dma.done %s784, 8192
        $region56: #{tpu_custom_call.1} parent=51 // pred_fallthru
          _
      $region52: #{tpu_custom_call.1} parent=5 // pred_fallthru
        _
    $region6: #{tpu_custom_call.1} parent=1 // loop_footer
      %s20 = sadd.s32 1, %s16
    $region7: #{tpu_custom_call.1} parent=1 // loop_footer_branch
      %15 = sbr.rel target = $region3
    $region8: #{tpu_custom_call.1} parent=1 // loop_exit
      _
    %789 = vsyncpa [#allocation3], 1
    %s790 = scalar_lea.sflag [#allocation3], 1
    %791 = vsyncpa %s790, 1
    %792 = vsyncpa [#allocation6], 1
    %793 = vsyncpa [#allocation4], 1
    %s794 = scalar_lea.sflag [#allocation4], 1
    %795 = vsyncpa %s794, 1

</llo_original>
